<compile_context>
chip_gen: v7x
topology: tpu7x:2x2x1
jax: 0.10.0
libtpu: 0.0.40
codegen_flags: <defaults>
</compile_context>

<pallas_src>
import functools

import jax
import jax.numpy as jnp
from jax.experimental import pallas as pl
from jax.experimental.pallas import tpu as pltpu

LANE = 128
SUBLANE = 8


def _round_up(n, m):
    return (n + m - 1) // m * m


def _leaky_relu(x, negative_slope=0.01):
    # matches torch.nn.LeakyReLU() default slope
    return jnp.where(x >= 0, x, negative_slope * x)


# ----------------------------------------------------------------------------
# Kernel
# ----------------------------------------------------------------------------
def _coupling_kernel(
    x_ref, mask_ref, inv_mask_ref,
    w1_ref, b1_ref, w2_ref, b2_ref,
    w3s_ref, b3s_ref, w3t_ref, b3t_ref,
    out_ref, *, dim,
):
    x = x_ref[...].astype(jnp.float32)                 # (TB, DP), cols >= dim are padding
    mask = mask_ref[...].astype(jnp.float32)           # (1, DP), zero beyond dim
    inv_mask = inv_mask_ref[...].astype(jnp.float32)   # (1, DP), zero beyond dim

    bx = mask * x                                      # b * x  (zero beyond dim)

    # Fused s/t MLP: bf16 MXU operands, f32 accumulation, f32 elementwise.
    h = jnp.dot(bx.astype(jnp.bfloat16), w1_ref[...],
                preferred_element_type=jnp.float32) + b1_ref[...]      # (TB, 2*hid)
    h = _leaky_relu(h)
    h = jnp.dot(h.astype(jnp.bfloat16), w2_ref[...],
                preferred_element_type=jnp.float32) + b2_ref[...]      # (TB, 2*hid)
    h = _leaky_relu(h).astype(jnp.bfloat16)

    # Layer 3 split into two dots whose outputs are already lane-aligned at
    # columns [0:dim] of a 128-wide slab (zero elsewhere).
    s_wide = jnp.dot(h, w3s_ref[...], preferred_element_type=jnp.float32) + b3s_ref[...]
    t_wide = jnp.dot(h, w3t_ref[...], preferred_element_type=jnp.float32) + b3t_ref[...]

    s_wide = jnp.tanh(s_wide)                          # tanh(0) = 0 beyond dim

    # z = b*x + (1-b) * (x * exp(s(b*x)) + t(b*x)); padding lanes stay exactly 0
    z_wide = bx + inv_mask * (x * jnp.exp(s_wide) + t_wide)
    log_det = jnp.sum(inv_mask * s_wide, axis=1, keepdims=True)        # (TB, 1)

    # Pack log_det into lane `dim` (currently zero) -> one lane-dense store.
    col = jax.lax.broadcasted_iota(jnp.int32, z_wide.shape, 1)
    slab = jnp.where(col == dim, jnp.broadcast_to(log_det, z_wide.shape), z_wide)
    out_ref[...] = slab.astype(out_ref.dtype)


# ----------------------------------------------------------------------------
# One-time parameter fusion / padding (hoisted out of the hot path)
# ----------------------------------------------------------------------------
def prepare_fused_params(params, dim, hid_dim, mode=1.0):
    dp = _round_up(dim + 1, LANE)   # lane-padded feature width (z + log_det lane)

    mask = (jnp.arange(mode, mode + dim, dtype=jnp.float32) % 2.0).reshape(1, dim)
    inv_mask = 1.0 - mask
    mask_p = jnp.pad(mask, ((0, 0), (0, dp - dim)))
    inv_mask_p = jnp.pad(inv_mask, ((0, 0), (0, dp - dim)))

    # Layer 1: concat s/t along the output axis; pad input rows dim -> dp.
    w1 = jnp.concatenate([params["w1s"], params["w1t"]], axis=1)           # (dim, 2h)
    w1 = jnp.pad(w1, ((0, dp - dim), (0, 0))).astype(jnp.bfloat16)          # (dp, 2h)
    b1 = jnp.concatenate([params["b1s"], params["b1t"]], axis=1)            # (1, 2h)

    # Layer 2: block-diagonal (2h, 2h).
    zhh = jnp.zeros((hid_dim, hid_dim), jnp.float32)
    w2 = jnp.block([[params["w2s"], zhh],
                    [zhh, params["w2t"]]]).astype(jnp.bfloat16)              # (2h, 2h)
    b2 = jnp.concatenate([params["b2s"], params["b2t"]], axis=1)            # (1, 2h)

    # Layer 3: two (2h, dp) weights, outputs aligned at columns [0:dim].
    zhd = jnp.zeros((hid_dim, dim), jnp.float32)
    w3s = jnp.concatenate([params["w3s"], zhd], axis=0)                     # (2h, dim)
    w3s = jnp.pad(w3s, ((0, 0), (0, dp - dim))).astype(jnp.bfloat16)        # (2h, dp)
    w3t = jnp.concatenate([zhd, params["w3t"]], axis=0)
    w3t = jnp.pad(w3t, ((0, 0), (0, dp - dim))).astype(jnp.bfloat16)
    b3s = jnp.pad(params["b3s"], ((0, 0), (0, dp - dim)))                   # (1, dp)
    b3t = jnp.pad(params["b3t"], ((0, 0), (0, dp - dim)))

    return dict(dp=dp, mask=mask_p, inv_mask=inv_mask_p,
                w1=w1, b1=b1, w2=w2, b2=b2,
                w3s=w3s, b3s=b3s, w3t=w3t, b3t=b3t)


# ----------------------------------------------------------------------------
# Forward wrapper
# ----------------------------------------------------------------------------
def affine_coupling_1d_forward(x, fused, *, dim, tile_b=None):
    """x: (B, dim) float32.  Returns (z: (B, dim), log_det: (B,))."""
    B = x.shape[0]
    dp = fused["dp"]

    if tile_b is None:
        # Large tiles amortize per-grid-step overhead; toy batch -> one tile.
        tile_b = min(512, _round_up(B, SUBLANE))
    b_pad = _round_up(B, tile_b)

    # Layout plumbing only: lane-pad the features, sublane-pad the batch.
    x_p = jnp.pad(x.astype(jnp.float32), ((0, b_pad - B), (0, dp - dim)))

    grid = (b_pad // tile_b,)
    const2 = lambda i: (0, 0)

    in_specs = [
        pl.BlockSpec((tile_b, dp), lambda i: (i, 0)),     # x (batch-tiled)
        pl.BlockSpec(fused["mask"].shape, const2),        # mask     (VMEM-resident)
        pl.BlockSpec(fused["inv_mask"].shape, const2),    # inv_mask (VMEM-resident)
        pl.BlockSpec(fused["w1"].shape, const2),
        pl.BlockSpec(fused["b1"].shape, const2),
        pl.BlockSpec(fused["w2"].shape, const2),
        pl.BlockSpec(fused["b2"].shape, const2),
        pl.BlockSpec(fused["w3s"].shape, const2),
        pl.BlockSpec(fused["b3s"].shape, const2),
        pl.BlockSpec(fused["w3t"].shape, const2),
        pl.BlockSpec(fused["b3t"].shape, const2),
    ]

    out = pl.pallas_call(
        functools.partial(_coupling_kernel, dim=dim),
        grid=grid,
        in_specs=in_specs,
        out_specs=pl.BlockSpec((tile_b, dp), lambda i: (i, 0)),
        out_shape=jax.ShapeDtypeStruct((b_pad, dp), jnp.float32),
        compiler_params=pltpu.CompilerParams(
            dimension_semantics=("parallel",)),
    )(x_p, fused["mask"], fused["inv_mask"],
      fused["w1"], fused["b1"], fused["w2"], fused["b2"],
      fused["w3s"], fused["b3s"], fused["w3t"], fused["b3t"])

    z = out[:B, :dim]
    log_det = out[:B, dim]
    return z, log_det


# ----------------------------------------------------------------------------
# Parameters / reference
# ----------------------------------------------------------------------------
def init_params(key, dim, hid_dim):
    """Deterministic synthetic parameters; weights stored (in, out), biases (1, out)."""
    keys = jax.random.split(key, 12)

    def lin(kw, kb, n_in, n_out):
        scale = 1.0 / jnp.sqrt(n_in)
        w = jax.random.uniform(kw, (n_in, n_out), jnp.float32, -scale, scale)
        b = jax.random.uniform(kb, (1, n_out), jnp.float32, -scale, scale)
        return w, b

    w1s, b1s = lin(keys[0], keys[1], dim, hid_dim)
    w2s, b2s = lin(keys[2], keys[3], hid_dim, hid_dim)
    w3s, b3s = lin(keys[4], keys[5], hid_dim, dim)
    w1t, b1t = lin(keys[6], keys[7], dim, hid_dim)
    w2t, b2t = lin(keys[8], keys[9], hid_dim, hid_dim)
    w3t, b3t = lin(keys[10], keys[11], hid_dim, dim)
    return dict(w1s=w1s, b1s=b1s, w2s=w2s, b2s=b2s, w3s=w3s, b3s=b3s,
                w1t=w1t, b1t=b1t, w2t=w2t, b2t=b2t, w3t=w3t, b3t=b3t)


def make_mask(dim, mode=1.0):
    # torch.arange(mode, mode + dim).unsqueeze(0) % 2
    return (jnp.arange(mode, mode + dim, dtype=jnp.float32) % 2.0).reshape(1, dim)


def reference_forward(x, params, mask):
    """Plain-JAX reference (same bf16-operand / f32-accumulate matmul precision)."""
    def dot_bf16(a, w):
        return jnp.dot(a.astype(jnp.bfloat16), w.astype(jnp.bfloat16),
                       preferred_element_type=jnp.float32)

    bx = mask * x

    def mlp(inp, w1, b1, w2, b2, w3, b3):
        h = _leaky_relu(dot_bf16(inp, w1) + b1)
        h = _leaky_relu(dot_bf16(h, w2) + b2)
        return dot_bf16(h, w3) + b3

    s_bx = jnp.tanh(mlp(bx, params["w1s"], params["b1s"], params["w2s"],
                        params["b2s"], params["w3s"], params["b3s"]))
    t_bx = mlp(bx, params["w1t"], params["b1t"], params["w2t"],
               params["b2t"], params["w3t"], params["b3t"])
    z = bx + (1 - mask) * (x * jnp.exp(s_bx) + t_bx)
    log_det = ((1 - mask) * s_bx).sum(1)
    return z, log_det


if __name__ == "__main__":
    dim, hid_dim, batch, mode = 16, 32, 8, 1.0

    key = jax.random.PRNGKey(0)
    k_x, k_p = jax.random.split(key)
    x = jax.random.normal(k_x, (batch, dim), dtype=jnp.float32)
    params = init_params(k_p, dim, hid_dim)

    fused = prepare_fused_params(params, dim, hid_dim, mode)
    z, log_det = affine_coupling_1d_forward(x, fused, dim=dim)
    jax.block_until_ready((z, log_det))

    mask = make_mask(dim, mode)
    z_ref, ld_ref = reference_forward(x, params, mask)
    assert jnp.allclose(z, z_ref, atol=1e-4, rtol=1e-4), "z mismatch"
    assert jnp.allclose(log_det, ld_ref, atol=1e-4, rtol=1e-4), "log_det mismatch"

    print("KERNEL_OK")
</pallas_src>

<mosaic_0001>
module attributes {stable_mosaic.version = 11 : i64} {
  func.func @_coupling_kernel(%arg0: i32, %arg1: memref<8x128xf32, #tpu.memory_space<vmem>>, %arg2: memref<1x128xf32, #tpu.memory_space<vmem>>, %arg3: memref<1x128xf32, #tpu.memory_space<vmem>>, %arg4: memref<128x64xbf16, #tpu.memory_space<vmem>>, %arg5: memref<1x64xf32, #tpu.memory_space<vmem>>, %arg6: memref<64x64xbf16, #tpu.memory_space<vmem>>, %arg7: memref<1x64xf32, #tpu.memory_space<vmem>>, %arg8: memref<64x128xbf16, #tpu.memory_space<vmem>>, %arg9: memref<1x128xf32, #tpu.memory_space<vmem>>, %arg10: memref<64x128xbf16, #tpu.memory_space<vmem>>, %arg11: memref<1x128xf32, #tpu.memory_space<vmem>>, %arg12: memref<8x128xf32, #tpu.memory_space<vmem>>) attributes {dimension_semantics = [#tpu.dimension_semantics<parallel>], iteration_bounds = array<i64: 1>, scalar_prefetch = 0 : i64, scratch_operands = 0 : i64, tpu.core_type = #tpu.core_type<tc>, window_params = [{transform_indices = @transform_0, window_bounds = array<i64: 8, 128>}, {pipeline_mode = #tpu.pipeline_mode<synchronous>, transform_indices = @transform_1, window_bounds = array<i64: 1, 128>}, {pipeline_mode = #tpu.pipeline_mode<synchronous>, transform_indices = @transform_2, window_bounds = array<i64: 1, 128>}, {pipeline_mode = #tpu.pipeline_mode<synchronous>, transform_indices = @transform_3, window_bounds = array<i64: 128, 64>}, {pipeline_mode = #tpu.pipeline_mode<synchronous>, transform_indices = @transform_4, window_bounds = array<i64: 1, 64>}, {pipeline_mode = #tpu.pipeline_mode<synchronous>, transform_indices = @transform_5, window_bounds = array<i64: 64, 64>}, {pipeline_mode = #tpu.pipeline_mode<synchronous>, transform_indices = @transform_6, window_bounds = array<i64: 1, 64>}, {pipeline_mode = #tpu.pipeline_mode<synchronous>, transform_indices = @transform_7, window_bounds = array<i64: 64, 128>}, {pipeline_mode = #tpu.pipeline_mode<synchronous>, transform_indices = @transform_8, window_bounds = array<i64: 1, 128>}, {pipeline_mode = #tpu.pipeline_mode<synchronous>, transform_indices = @transform_9, window_bounds = array<i64: 64, 128>}, {pipeline_mode = #tpu.pipeline_mode<synchronous>, transform_indices = @transform_10, window_bounds = array<i64: 1, 128>}, {transform_indices = @transform_11, window_bounds = array<i64: 8, 128>}]} {
    %c0 = arith.constant 0 : index
    %c0_0 = arith.constant 0 : index
    %0 = vector.load %arg1[%c0, %c0_0] : memref<8x128xf32, #tpu.memory_space<vmem>>, vector<8x128xf32>
    %c0_1 = arith.constant 0 : index
    %c0_2 = arith.constant 0 : index
    %1 = vector.load %arg2[%c0_1, %c0_2] : memref<1x128xf32, #tpu.memory_space<vmem>>, vector<1x128xf32>
    %c0_3 = arith.constant 0 : index
    %c0_4 = arith.constant 0 : index
    %2 = vector.load %arg3[%c0_3, %c0_4] : memref<1x128xf32, #tpu.memory_space<vmem>>, vector<1x128xf32>
    %3 = vector.broadcast %1 : vector<1x128xf32> to vector<8x128xf32>
    %4 = arith.mulf %3, %0 : vector<8x128xf32>
    %5 = arith.truncf %4 : vector<8x128xf32> to vector<8x128xbf16>
    %c0_5 = arith.constant 0 : index
    %c0_6 = arith.constant 0 : index
    %6 = vector.load %arg4[%c0_5, %c0_6] : memref<128x64xbf16, #tpu.memory_space<vmem>>, vector<128x64xbf16>
    %cst = arith.constant dense<0.000000e+00> : vector<8x64xf32>
    %7 = tpu.matmul %5, %6, %cst {dimension_numbers = #tpu.dot_dimension_numbers<[1], [0], [0], [1], [0, 0, 1, 1], [], []>} : vector<8x128xbf16>, vector<128x64xbf16>, vector<8x64xf32> -> vector<8x64xf32>
    %c0_7 = arith.constant 0 : index
    %c0_8 = arith.constant 0 : index
    %8 = vector.load %arg5[%c0_7, %c0_8] : memref<1x64xf32, #tpu.memory_space<vmem>>, vector<1x64xf32>
    %9 = vector.broadcast %8 : vector<1x64xf32> to vector<8x64xf32>
    %10 = arith.addf %7, %9 : vector<8x64xf32>
    %cst_9 = arith.constant 0.000000e+00 : f32
    %11 = vector.broadcast %cst_9 : f32 to vector<8x64xf32>
    %12 = arith.cmpf oge, %10, %11 : vector<8x64xf32>
    %cst_10 = arith.constant 0.00999999977 : f32
    %13 = vector.broadcast %cst_10 : f32 to vector<8x64xf32>
    %14 = arith.mulf %13, %10 : vector<8x64xf32>
    %15 = arith.select %12, %10, %14 : vector<8x64xi1>, vector<8x64xf32>
    %16 = arith.truncf %15 : vector<8x64xf32> to vector<8x64xbf16>
    %c0_11 = arith.constant 0 : index
    %c0_12 = arith.constant 0 : index
    %17 = vector.load %arg6[%c0_11, %c0_12] : memref<64x64xbf16, #tpu.memory_space<vmem>>, vector<64x64xbf16>
    %cst_13 = arith.constant dense<0.000000e+00> : vector<8x64xf32>
    %18 = tpu.matmul %16, %17, %cst_13 {dimension_numbers = #tpu.dot_dimension_numbers<[1], [0], [0], [1], [0, 0, 1, 1], [], []>} : vector<8x64xbf16>, vector<64x64xbf16>, vector<8x64xf32> -> vector<8x64xf32>
    %c0_14 = arith.constant 0 : index
    %c0_15 = arith.constant 0 : index
    %19 = vector.load %arg7[%c0_14, %c0_15] : memref<1x64xf32, #tpu.memory_space<vmem>>, vector<1x64xf32>
    %20 = vector.broadcast %19 : vector<1x64xf32> to vector<8x64xf32>
    %21 = arith.addf %18, %20 : vector<8x64xf32>
    %cst_16 = arith.constant 0.000000e+00 : f32
    %22 = vector.broadcast %cst_16 : f32 to vector<8x64xf32>
    %23 = arith.cmpf oge, %21, %22 : vector<8x64xf32>
    %cst_17 = arith.constant 0.00999999977 : f32
    %24 = vector.broadcast %cst_17 : f32 to vector<8x64xf32>
    %25 = arith.mulf %24, %21 : vector<8x64xf32>
    %26 = arith.select %23, %21, %25 : vector<8x64xi1>, vector<8x64xf32>
    %27 = arith.truncf %26 : vector<8x64xf32> to vector<8x64xbf16>
    %c0_18 = arith.constant 0 : index
    %c0_19 = arith.constant 0 : index
    %28 = vector.load %arg8[%c0_18, %c0_19] : memref<64x128xbf16, #tpu.memory_space<vmem>>, vector<64x128xbf16>
    %cst_20 = arith.constant dense<0.000000e+00> : vector<8x128xf32>
    %29 = tpu.matmul %27, %28, %cst_20 {dimension_numbers = #tpu.dot_dimension_numbers<[1], [0], [0], [1], [0, 0, 1, 1], [], []>} : vector<8x64xbf16>, vector<64x128xbf16>, vector<8x128xf32> -> vector<8x128xf32>
    %c0_21 = arith.constant 0 : index
    %c0_22 = arith.constant 0 : index
    %30 = vector.load %arg9[%c0_21, %c0_22] : memref<1x128xf32, #tpu.memory_space<vmem>>, vector<1x128xf32>
    %31 = vector.broadcast %30 : vector<1x128xf32> to vector<8x128xf32>
    %32 = arith.addf %29, %31 : vector<8x128xf32>
    %c0_23 = arith.constant 0 : index
    %c0_24 = arith.constant 0 : index
    %33 = vector.load %arg10[%c0_23, %c0_24] : memref<64x128xbf16, #tpu.memory_space<vmem>>, vector<64x128xbf16>
    %cst_25 = arith.constant dense<0.000000e+00> : vector<8x128xf32>
    %34 = tpu.matmul %27, %33, %cst_25 {dimension_numbers = #tpu.dot_dimension_numbers<[1], [0], [0], [1], [0, 0, 1, 1], [], []>} : vector<8x64xbf16>, vector<64x128xbf16>, vector<8x128xf32> -> vector<8x128xf32>
    %c0_26 = arith.constant 0 : index
    %c0_27 = arith.constant 0 : index
    %35 = vector.load %arg11[%c0_26, %c0_27] : memref<1x128xf32, #tpu.memory_space<vmem>>, vector<1x128xf32>
    %36 = vector.broadcast %35 : vector<1x128xf32> to vector<8x128xf32>
    %37 = arith.addf %34, %36 : vector<8x128xf32>
    %38 = math.tanh %32 : vector<8x128xf32>
    %39 = math.exp %38 : vector<8x128xf32>
    %40 = arith.mulf %0, %39 : vector<8x128xf32>
    %41 = arith.addf %40, %37 : vector<8x128xf32>
    %42 = vector.broadcast %2 : vector<1x128xf32> to vector<8x128xf32>
    %43 = arith.mulf %42, %41 : vector<8x128xf32>
    %44 = arith.addf %4, %43 : vector<8x128xf32>
    %45 = vector.broadcast %2 : vector<1x128xf32> to vector<8x128xf32>
    %46 = arith.mulf %45, %38 : vector<8x128xf32>
    %cst_28 = arith.constant dense<0.000000e+00> : vector<8xf32>
    %47 = vector.multi_reduction <add>, %46, %cst_28 [1] : vector<8x128xf32> to vector<8xf32>
    %48 = vector.shape_cast %47 : vector<8xf32> to vector<8x1xf32>
    %49 = tpu.iota {dimensions = array<i32: 1>} : vector<8x128xi32>
    %c16_i32 = arith.constant 16 : i32
    %50 = vector.broadcast %c16_i32 : i32 to vector<8x128xi32>
    %51 = arith.cmpi eq, %49, %50 : vector<8x128xi32>
    %52 = vector.shape_cast %48 : vector<8x1xf32> to vector<8x1xf32>
    %53 = vector.broadcast %52 : vector<8x1xf32> to vector<8x128xf32>
    %54 = arith.select %51, %53, %44 : vector<8x128xi1>, vector<8x128xf32>
    %c0_29 = arith.constant 0 : index
    %c0_30 = arith.constant 0 : index
    %55 = vector.load %arg12[%c0_29, %c0_30] : memref<8x128xf32, #tpu.memory_space<vmem>>, vector<8x128xf32>
    tpu.vector_store %arg12[%c0_29, %c0_30], %54 {strides = array<i32>} : memref<8x128xf32, #tpu.memory_space<vmem>>, vector<8x128xf32>,
    return
  }
  func.func @transform_0(%arg0: i32) -> (i32, i32) {
    %c0_i32 = arith.constant 0 : i32
    %c0_i32_0 = arith.constant 0 : i32
    return %arg0, %c0_i32 : i32, i32
  }
  func.func @transform_1(%arg0: i32) -> (i32, i32) {
    %c0_i32 = arith.constant 0 : i32
    %c0_i32_0 = arith.constant 0 : i32
    %c0_i32_1 = arith.constant 0 : i32
    return %c0_i32, %c0_i32_0 : i32, i32
  }
  func.func @transform_2(%arg0: i32) -> (i32, i32) {
    %c0_i32 = arith.constant 0 : i32
    %c0_i32_0 = arith.constant 0 : i32
    %c0_i32_1 = arith.constant 0 : i32
    return %c0_i32, %c0_i32_0 : i32, i32
  }
  func.func @transform_3(%arg0: i32) -> (i32, i32) {
    %c0_i32 = arith.constant 0 : i32
    %c0_i32_0 = arith.constant 0 : i32
    %c0_i32_1 = arith.constant 0 : i32
    return %c0_i32, %c0_i32_0 : i32, i32
  }
  func.func @transform_4(%arg0: i32) -> (i32, i32) {
    %c0_i32 = arith.constant 0 : i32
    %c0_i32_0 = arith.constant 0 : i32
    %c0_i32_1 = arith.constant 0 : i32
    return %c0_i32, %c0_i32_0 : i32, i32
  }
  func.func @transform_5(%arg0: i32) -> (i32, i32) {
    %c0_i32 = arith.constant 0 : i32
    %c0_i32_0 = arith.constant 0 : i32
    %c0_i32_1 = arith.constant 0 : i32
    return %c0_i32, %c0_i32_0 : i32, i32
  }
  func.func @transform_6(%arg0: i32) -> (i32, i32) {
    %c0_i32 = arith.constant 0 : i32
    %c0_i32_0 = arith.constant 0 : i32
    %c0_i32_1 = arith.constant 0 : i32
    return %c0_i32, %c0_i32_0 : i32, i32
  }
  func.func @transform_7(%arg0: i32) -> (i32, i32) {
    %c0_i32 = arith.constant 0 : i32
    %c0_i32_0 = arith.constant 0 : i32
    %c0_i32_1 = arith.constant 0 : i32
    return %c0_i32, %c0_i32_0 : i32, i32
  }
  func.func @transform_8(%arg0: i32) -> (i32, i32) {
    %c0_i32 = arith.constant 0 : i32
    %c0_i32_0 = arith.constant 0 : i32
    %c0_i32_1 = arith.constant 0 : i32
    return %c0_i32, %c0_i32_0 : i32, i32
  }
  func.func @transform_9(%arg0: i32) -> (i32, i32) {
    %c0_i32 = arith.constant 0 : i32
    %c0_i32_0 = arith.constant 0 : i32
    %c0_i32_1 = arith.constant 0 : i32
    return %c0_i32, %c0_i32_0 : i32, i32
  }
  func.func @transform_10(%arg0: i32) -> (i32, i32) {
    %c0_i32 = arith.constant 0 : i32
    %c0_i32_0 = arith.constant 0 : i32
    %c0_i32_1 = arith.constant 0 : i32
    return %c0_i32, %c0_i32_0 : i32, i32
  }
  func.func @transform_11(%arg0: i32) -> (i32, i32) {
    %c0_i32 = arith.constant 0 : i32
    %c0_i32_0 = arith.constant 0 : i32
    return %arg0, %c0_i32 : i32, i32
  }
}

</mosaic_0001>

<llo_original>
// kernel: tpu_custom_call.1
$region0: #{tpu_custom_call.1}
  #allocation0 [shape = 'u32[]', space=smem, size = 0x4, offset = 0x4, fixed_abs, tag = 'smem constant byte address 0x4 - core index']
  #allocation1 [shape = 'u32[144,128]{1,0:T(1,128)}', space=vmem, size = 0x12000, scoped, tag = 'internal scratch']
  %s0 = inlined_call_operand.hbm [shape: f32[8,128], index: 0, kind: input, shape index: {}]
  %s1 = inlined_call_operand.vmem [shape: f32[1,128], index: 1, kind: input, shape index: {}]
  %s2 = inlined_call_operand.vmem [shape: f32[1,128], index: 2, kind: input, shape index: {}]
  %s3 = inlined_call_operand.vmem [shape: bf16[128,64], index: 3, kind: input, shape index: {}]
  %s4 = inlined_call_operand.vmem [shape: f32[1,64], index: 4, kind: input, shape index: {}]
  %s5 = inlined_call_operand.vmem [shape: bf16[64,64], index: 5, kind: input, shape index: {}]
  %s6 = inlined_call_operand.vmem [shape: f32[1,64], index: 6, kind: input, shape index: {}]
  %s7 = inlined_call_operand.vmem [shape: bf16[64,128], index: 7, kind: input, shape index: {}]
  %s8 = inlined_call_operand.vmem [shape: f32[1,128], index: 8, kind: input, shape index: {}]
  %s9 = inlined_call_operand.vmem [shape: bf16[64,128], index: 9, kind: input, shape index: {}]
  %s10 = inlined_call_operand.vmem [shape: f32[1,128], index: 10, kind: input, shape index: {}]
  %s11 = inlined_call_operand.hbm [shape: f32[8,128], index: 11, kind: output, shape index: {}]
  %s12 = sld [smem:[#allocation0]]
  $region58: #{tpu_custom_call.1} parent=0
    _
  %s14 = ssub.s32 1, %s12
  %s15 = scalar_select 0, %s14, %s12
  $region1: #{tpu_custom_call.1} parent=0
    #allocation2 [shape = 'u8[4096]{0}', space=vmem, size = 0x1000, scoped, tag = 'input window, operand 0, single buffered']
    #allocation3 [shape = 's32[1]{0}', space=sflag, size = 0x4, scoped, tag = 'scoped memory for tpu_custom_call.1']
    #allocation4 [shape = 's32[1]{0}', space=sflag, size = 0x4, scoped, tag = 'scoped memory for tpu_custom_call.1']
    #allocation5 [shape = 'u8[4096]{0}', space=vmem, size = 0x1000, scoped, tag = 'output window, operand 0, single buffered']
    %16 = vsyncpa [#allocation3], 0
    %17 = vsyncpa [#allocation4], 0
    // Predicated region
    $region2: #{tpu_custom_call.1} parent=1 // pred_check
      _
    $region3: #{tpu_custom_call.1} parent=1 // pred_check_branch
      %19 = sbr.rel (0) target = $region5
    $region4: #{tpu_custom_call.1} parent=1 // pred_region
      %s21 = ssub.s32 128, 128
      %22 = vsyncadd [#allocation3], %s21
      %s24 = sshll.u32 [#allocation2], 4
      %s25 = int_to_ptr.vmem [resolvable:$true] %s24
      %27 = dma.hbm_to_vmem [thread:$0]  %s0, 128, %s25, [#allocation3]
    $region5: #{tpu_custom_call.1} parent=1 // pred_fallthru
      _
    // Predicated region
    $region6: #{tpu_custom_call.1} parent=1 // pred_check
      _
    $region7: #{tpu_custom_call.1} parent=1 // pred_check_branch
      %29 = sbr.rel (0) target = $region9
    $region8: #{tpu_custom_call.1} parent=1 // pred_region
      _
    $region9: #{tpu_custom_call.1} parent=1 // pred_fallthru
      _
    // Predicated region
    $region10: #{tpu_custom_call.1} parent=1 // pred_check
      _
    $region11: #{tpu_custom_call.1} parent=1 // pred_check_branch
      %31 = sbr.rel (0) target = $region13
    $region12: #{tpu_custom_call.1} parent=1 // pred_region
      _
    $region13: #{tpu_custom_call.1} parent=1 // pred_fallthru
      _
    // Predicated region
    $region14: #{tpu_custom_call.1} parent=1 // pred_check
      _
    $region15: #{tpu_custom_call.1} parent=1 // pred_check_branch
      %33 = sbr.rel (0) target = $region17
    $region16: #{tpu_custom_call.1} parent=1 // pred_region
      _
    $region17: #{tpu_custom_call.1} parent=1 // pred_fallthru
      _
    // Predicated region
    $region18: #{tpu_custom_call.1} parent=1 // pred_check
      _
    $region19: #{tpu_custom_call.1} parent=1 // pred_check_branch
      %35 = sbr.rel (0) target = $region21
    $region20: #{tpu_custom_call.1} parent=1 // pred_region
      _
    $region21: #{tpu_custom_call.1} parent=1 // pred_fallthru
      _
    // Predicated region
    $region22: #{tpu_custom_call.1} parent=1 // pred_check
      _
    $region23: #{tpu_custom_call.1} parent=1 // pred_check_branch
      %37 = sbr.rel (0) target = $region25
    $region24: #{tpu_custom_call.1} parent=1 // pred_region
      _
    $region25: #{tpu_custom_call.1} parent=1 // pred_fallthru
      _
    // Predicated region
    $region26: #{tpu_custom_call.1} parent=1 // pred_check
      _
    $region27: #{tpu_custom_call.1} parent=1 // pred_check_branch
      %39 = sbr.rel (0) target = $region29
    $region28: #{tpu_custom_call.1} parent=1 // pred_region
      _
    $region29: #{tpu_custom_call.1} parent=1 // pred_fallthru
      _
    // Predicated region
    $region30: #{tpu_custom_call.1} parent=1 // pred_check
      _
    $region31: #{tpu_custom_call.1} parent=1 // pred_check_branch
      %41 = sbr.rel (0) target = $region33
    $region32: #{tpu_custom_call.1} parent=1 // pred_region
      _
    $region33: #{tpu_custom_call.1} parent=1 // pred_fallthru
      _
    // Predicated region
    $region34: #{tpu_custom_call.1} parent=1 // pred_check
      _
    $region35: #{tpu_custom_call.1} parent=1 // pred_check_branch
      %43 = sbr.rel (0) target = $region37
    $region36: #{tpu_custom_call.1} parent=1 // pred_region
      _
    $region37: #{tpu_custom_call.1} parent=1 // pred_fallthru
      _
    // Predicated region
    $region38: #{tpu_custom_call.1} parent=1 // pred_check
      _
    $region39: #{tpu_custom_call.1} parent=1 // pred_check_branch
      %45 = sbr.rel (0) target = $region41
    $region40: #{tpu_custom_call.1} parent=1 // pred_region
      _
    $region41: #{tpu_custom_call.1} parent=1 // pred_fallthru
      _
    // Predicated region
    $region42: #{tpu_custom_call.1} parent=1 // pred_check
      _
    $region43: #{tpu_custom_call.1} parent=1 // pred_check_branch
      %47 = sbr.rel (0) target = $region45
    $region44: #{tpu_custom_call.1} parent=1 // pred_region
      _
    $region45: #{tpu_custom_call.1} parent=1 // pred_fallthru
      _
    // Predicated region
    $region46: #{tpu_custom_call.1} parent=1 // pred_check
      _
    $region47: #{tpu_custom_call.1} parent=1 // pred_check_branch
      %49 = sbr.rel (0) target = $region49
    $region48: #{tpu_custom_call.1} parent=1 // pred_region
      %50 = dma.done [#allocation3], 128
    $region49: #{tpu_custom_call.1} parent=1 // pred_fallthru
      _
    %v52 = vld [vmem:[#allocation2] sm:$0xff]
    %v53 = vld [vmem:[%s1] sm:$0x1]
    %v54 = vld [vmem:[%s2] sm:$0x1]
    %v56 = vlaneseq
    %v57 = vshrl.u32 %v56, 7
    %v58 = vsub.s32 0, %v57
    %v59 = vrot.slane %v53, %v58
    %v61 = vmul.f32 %v59, %v52
    %v62 = vpack.c.bf16 %v61, %v61
    %v63 = vld [vmem:[%s3] sm:$0xf]
    %v64 = vld [vmem:[%s3 + $0x4] sm:$0xf]
    %v65 = vld [vmem:[%s3 + $0x8] sm:$0xf]
    %v66 = vld [vmem:[%s3 + $0xc] sm:$0xf]
    %v67 = vld [vmem:[%s3 + $0x10] sm:$0xf]
    %v68 = vld [vmem:[%s3 + $0x14] sm:$0xf]
    %v69 = vld [vmem:[%s3 + $0x18] sm:$0xf]
    %v70 = vld [vmem:[%s3 + $0x1c] sm:$0xf]
    %v71 = vld [vmem:[%s3 + $0x20] sm:$0xf]
    %v72 = vld [vmem:[%s3 + $0x24] sm:$0xf]
    %v73 = vld [vmem:[%s3 + $0x28] sm:$0xf]
    %v74 = vld [vmem:[%s3 + $0x2c] sm:$0xf]
    %v75 = vld [vmem:[%s3 + $0x30] sm:$0xf]
    %v76 = vld [vmem:[%s3 + $0x34] sm:$0xf]
    %v77 = vld [vmem:[%s3 + $0x38] sm:$0xf]
    %v78 = vld [vmem:[%s3 + $0x3c] sm:$0xf]
    %v79 = vld [vmem:[%s4] sm:$0x1]
    %v81 = vlaneseq
    %v82 = vshrl.u32 %v81, 7
    %v83 = vsub.s32 0, %v82
    %v84 = vrot.slane %v79, %v83
    %v102 = vunpack.c.l.b16 %v63
    %v103 = vunpack.c.l.b16 %v64
    %v104 = vunpack.c.l.b16 %v65
    %v105 = vunpack.c.l.b16 %v66
    %v106 = vunpack.c.l.b16 %v67
    %v107 = vunpack.c.l.b16 %v68
    %v108 = vunpack.c.l.b16 %v69
    %v109 = vunpack.c.l.b16 %v70
    %v110 = vunpack.c.l.b16 %v71
    %v111 = vunpack.c.l.b16 %v72
    %v112 = vunpack.c.l.b16 %v73
    %v113 = vunpack.c.l.b16 %v74
    %v114 = vunpack.c.l.b16 %v75
    %v115 = vunpack.c.l.b16 %v76
    %v116 = vunpack.c.l.b16 %v77
    %v117 = vunpack.c.l.b16 %v78
    %v118 = vpack.c.b16 %v103, %v102
    %v119 = vpack.c.b16 %v105, %v104
    %v120 = vpack.c.b16 %v107, %v106
    %v121 = vpack.c.b16 %v109, %v108
    %v122 = vpack.c.b16 %v111, %v110
    %v123 = vpack.c.b16 %v113, %v112
    %v124 = vpack.c.b16 %v115, %v114
    %v125 = vpack.c.b16 %v117, %v116
    %134 = vmatprep.subr.bf16.mxu0 0
    %135 = vmatpush1.bf16.msra.mxu0 %v118
    %136 = vmatprep.subr.bf16.mxu0 0
    %137 = vmatpush1.bf16.msra.mxu0 %v119
    %138 = vmatprep.subr.bf16.mxu0 0
    %139 = vmatpush1.bf16.msra.mxu0 %v120
    %140 = vmatprep.subr.bf16.mxu0 0
    %141 = vmatpush1.bf16.msra.mxu0 %v121
    %142 = vmatprep.subr.bf16.mxu0 0
    %143 = vmatpush1.bf16.msra.mxu0 %v122
    %144 = vmatprep.subr.bf16.mxu0 0
    %145 = vmatpush1.bf16.msra.mxu0 %v123
    %146 = vmatprep.subr.bf16.mxu0 0
    %147 = vmatpush1.bf16.msra.mxu0 %v124
    %148 = vmatprep.subr.bf16.mxu0 0
    %149 = vmatpush1.bf16.msra.mxu0 %v125
    %150 = vmatprep.subr.bf16.mxu0 0
    %151 = vmatpush1.bf16.msra.mxu0 0
    %152 = vmatprep.subr.bf16.mxu0 0
    %153 = vmatpush1.bf16.msra.mxu0 0
    %154 = vmatprep.subr.bf16.mxu0 0
    %155 = vmatpush1.bf16.msra.mxu0 0
    %156 = vmatprep.subr.bf16.mxu0 0
    %157 = vmatpush1.bf16.msra.mxu0 0
    %158 = vmatprep.subr.bf16.mxu0 0
    %159 = vmatpush1.bf16.msra.mxu0 0
    %160 = vmatprep.subr.bf16.mxu0 0
    %161 = vmatpush1.bf16.msra.mxu0 0
    %162 = vmatprep.subr.bf16.mxu0 0
    %163 = vmatpush1.bf16.msra.mxu0 0
    %164 = vmatprep.subr.bf16.mxu0 0
    %165 = vmatpush1.bf16.msra.mxu0 0
    %166 = vmatprep.mubr.bf16.mxu0 0
    %167 = vmatmul.mubr.bf16.gmra.mrb[0].mxu0 %v62
    %v168 = vpop.f32.mrb[0].mxu0
    %v169 = vadd.f32 %v84, %v168
    %v170 = vpop.f32.mrb[0].mxu0
    %v171 = vpop.f32.mrb[0].mxu0
    %v172 = vpop.f32.mrb[0].mxu0
    %173 = vdwg.mxu0
    %vm174 = vcmp.ge.f32.partialorder %v169, 0.0
    %v175 = vmul.f32 %v169, 0.01
    %v176 = vsel %vm174, %v169, %v175
    %v177 = vpack.c.bf16 %v176, %v176
    %v178 = vld [vmem:[%s5] sm:$0xf]
    %v179 = vld [vmem:[%s5 + $0x4] sm:$0xf]
    %v180 = vld [vmem:[%s5 + $0x8] sm:$0xf]
    %v181 = vld [vmem:[%s5 + $0xc] sm:$0xf]
    %v182 = vld [vmem:[%s5 + $0x10] sm:$0xf]
    %v183 = vld [vmem:[%s5 + $0x14] sm:$0xf]
    %v184 = vld [vmem:[%s5 + $0x18] sm:$0xf]
    %v185 = vld [vmem:[%s5 + $0x1c] sm:$0xf]
    %v186 = vld [vmem:[%s6] sm:$0x1]
    %v188 = vlaneseq
    %v189 = vshrl.u32 %v188, 7
    %v190 = vsub.s32 0, %v189
    %v191 = vrot.slane %v186, %v190
    %v201 = vunpack.c.l.b16 %v178
    %v202 = vunpack.c.l.b16 %v179
    %v203 = vunpack.c.l.b16 %v180
    %v204 = vunpack.c.l.b16 %v181
    %v205 = vunpack.c.l.b16 %v182
    %v206 = vunpack.c.l.b16 %v183
    %v207 = vunpack.c.l.b16 %v184
    %v208 = vunpack.c.l.b16 %v185
    %v209 = vpack.c.b16 %v202, %v201
    %v210 = vpack.c.b16 %v204, %v203
    %v211 = vpack.c.b16 %v206, %v205
    %v212 = vpack.c.b16 %v208, %v207
    %vm217 = vcmask 523264
    %v219 = vsel %vm217, %v177, 0
    %221 = vmatprep.subr.bf16.mxu0 0
    %222 = vmatpush1.bf16.msra.mxu0 %v209
    %223 = vmatprep.subr.bf16.mxu0 0
    %224 = vmatpush1.bf16.msra.mxu0 %v210
    %225 = vmatprep.subr.bf16.mxu0 0
    %226 = vmatpush1.bf16.msra.mxu0 %v211
    %227 = vmatprep.subr.bf16.mxu0 0
    %228 = vmatpush1.bf16.msra.mxu0 %v212
    %229 = vmatprep.subr.bf16.mxu0 0
    %230 = vmatpush1.bf16.msra.mxu0 0
    %231 = vmatprep.subr.bf16.mxu0 0
    %232 = vmatpush1.bf16.msra.mxu0 0
    %233 = vmatprep.subr.bf16.mxu0 0
    %234 = vmatpush1.bf16.msra.mxu0 0
    %235 = vmatprep.subr.bf16.mxu0 0
    %236 = vmatpush1.bf16.msra.mxu0 0
    %237 = vmatprep.subr.bf16.mxu0 0
    %238 = vmatpush1.bf16.msra.mxu0 0
    %239 = vmatprep.subr.bf16.mxu0 0
    %240 = vmatpush1.bf16.msra.mxu0 0
    %241 = vmatprep.subr.bf16.mxu0 0
    %242 = vmatpush1.bf16.msra.mxu0 0
    %243 = vmatprep.subr.bf16.mxu0 0
    %244 = vmatpush1.bf16.msra.mxu0 0
    %245 = vmatprep.subr.bf16.mxu0 0
    %246 = vmatpush1.bf16.msra.mxu0 0
    %247 = vmatprep.subr.bf16.mxu0 0
    %248 = vmatpush1.bf16.msra.mxu0 0
    %249 = vmatprep.subr.bf16.mxu0 0
    %250 = vmatpush1.bf16.msra.mxu0 0
    %251 = vmatprep.subr.bf16.mxu0 0
    %252 = vmatpush1.bf16.msra.mxu0 0
    %253 = vmatprep.mubr.bf16.mxu0 0
    %254 = vmatmul.mubr.bf16.gmra.mrb[0].mxu0 %v219
    %v255 = vpop.f32.mrb[0].mxu0
    %v256 = vadd.f32 %v191, %v255
    %v257 = vpop.f32.mrb[0].mxu0
    %v258 = vpop.f32.mrb[0].mxu0
    %v259 = vpop.f32.mrb[0].mxu0
    %260 = vdwg.mxu0
    %vm261 = vcmp.ge.f32.partialorder %v256, 0.0
    %v262 = vmul.f32 %v256, 0.01
    %v263 = vsel %vm261, %v256, %v262
    %v264 = vpack.c.bf16 %v263, %v263
    %v265 = vld [vmem:[%s7] sm:$0xf]
    %v266 = vld [vmem:[%s7 + $0x4] sm:$0xf]
    %v267 = vld [vmem:[%s7 + $0x8] sm:$0xf]
    %v268 = vld [vmem:[%s7 + $0xc] sm:$0xf]
    %v269 = vld [vmem:[%s7 + $0x10] sm:$0xf]
    %v270 = vld [vmem:[%s7 + $0x14] sm:$0xf]
    %v271 = vld [vmem:[%s7 + $0x18] sm:$0xf]
    %v272 = vld [vmem:[%s7 + $0x1c] sm:$0xf]
    %v273 = vld [vmem:[%s8] sm:$0x1]
    %v275 = vlaneseq
    %v276 = vshrl.u32 %v275, 7
    %v277 = vsub.s32 0, %v276
    %v278 = vrot.slane %v273, %v277
    %v288 = vunpack.c.l.b16 %v265
    %v289 = vunpack.c.l.b16 %v266
    %v290 = vunpack.c.l.b16 %v267
    %v291 = vunpack.c.l.b16 %v268
    %v292 = vunpack.c.l.b16 %v269
    %v293 = vunpack.c.l.b16 %v270
    %v294 = vunpack.c.l.b16 %v271
    %v295 = vunpack.c.l.b16 %v272
    %v296 = vpack.c.b16 %v289, %v288
    %v297 = vpack.c.b16 %v291, %v290
    %v298 = vpack.c.b16 %v293, %v292
    %v299 = vpack.c.b16 %v295, %v294
    %v305 = vsel %vm217, %v264, 0
    %307 = vmatprep.subr.bf16.mxu0 0
    %308 = vmatpush1.bf16.msra.mxu0 %v296
    %309 = vmatprep.subr.bf16.mxu0 0
    %310 = vmatpush1.bf16.msra.mxu0 %v297
    %311 = vmatprep.subr.bf16.mxu0 0
    %312 = vmatpush1.bf16.msra.mxu0 %v298
    %313 = vmatprep.subr.bf16.mxu0 0
    %314 = vmatpush1.bf16.msra.mxu0 %v299
    %315 = vmatprep.subr.bf16.mxu0 0
    %316 = vmatpush1.bf16.msra.mxu0 0
    %317 = vmatprep.subr.bf16.mxu0 0
    %318 = vmatpush1.bf16.msra.mxu0 0
    %319 = vmatprep.subr.bf16.mxu0 0
    %320 = vmatpush1.bf16.msra.mxu0 0
    %321 = vmatprep.subr.bf16.mxu0 0
    %322 = vmatpush1.bf16.msra.mxu0 0
    %323 = vmatprep.subr.bf16.mxu0 0
    %324 = vmatpush1.bf16.msra.mxu0 0
    %325 = vmatprep.subr.bf16.mxu0 0
    %326 = vmatpush1.bf16.msra.mxu0 0
    %327 = vmatprep.subr.bf16.mxu0 0
    %328 = vmatpush1.bf16.msra.mxu0 0
    %329 = vmatprep.subr.bf16.mxu0 0
    %330 = vmatpush1.bf16.msra.mxu0 0
    %331 = vmatprep.subr.bf16.mxu0 0
    %332 = vmatpush1.bf16.msra.mxu0 0
    %333 = vmatprep.subr.bf16.mxu0 0
    %334 = vmatpush1.bf16.msra.mxu0 0
    %335 = vmatprep.subr.bf16.mxu0 0
    %336 = vmatpush1.bf16.msra.mxu0 0
    %337 = vmatprep.subr.bf16.mxu0 0
    %338 = vmatpush1.bf16.msra.mxu0 0
    %339 = vmatprep.mubr.bf16.mxu0 0
    %340 = vmatmul.mubr.bf16.gmra.mrb[0].mxu0 %v305
    %v341 = vpop.f32.mrb[0].mxu0
    %v342 = vadd.f32 %v278, %v341
    %v343 = vpop.f32.mrb[0].mxu0
    %v344 = vpop.f32.mrb[0].mxu0
    %v345 = vpop.f32.mrb[0].mxu0
    %346 = vdwg.mxu0
    %v347 = vld [vmem:[%s9] sm:$0xf]
    %v348 = vld [vmem:[%s9 + $0x4] sm:$0xf]
    %v349 = vld [vmem:[%s9 + $0x8] sm:$0xf]
    %v350 = vld [vmem:[%s9 + $0xc] sm:$0xf]
    %v351 = vld [vmem:[%s9 + $0x10] sm:$0xf]
    %v352 = vld [vmem:[%s9 + $0x14] sm:$0xf]
    %v353 = vld [vmem:[%s9 + $0x18] sm:$0xf]
    %v354 = vld [vmem:[%s9 + $0x1c] sm:$0xf]
    %v355 = vld [vmem:[%s10] sm:$0x1]
    %v357 = vlaneseq
    %v358 = vshrl.u32 %v357, 7
    %v359 = vsub.s32 0, %v358
    %v360 = vrot.slane %v355, %v359
    %v370 = vunpack.c.l.b16 %v347
    %v371 = vunpack.c.l.b16 %v348
    %v372 = vunpack.c.l.b16 %v349
    %v373 = vunpack.c.l.b16 %v350
    %v374 = vunpack.c.l.b16 %v351
    %v375 = vunpack.c.l.b16 %v352
    %v376 = vunpack.c.l.b16 %v353
    %v377 = vunpack.c.l.b16 %v354
    %v378 = vpack.c.b16 %v371, %v370
    %v379 = vpack.c.b16 %v373, %v372
    %v380 = vpack.c.b16 %v375, %v374
    %v381 = vpack.c.b16 %v377, %v376
    %386 = vmatprep.subr.bf16.mxu0 0
    %387 = vmatpush1.bf16.msra.mxu0 %v378
    %388 = vmatprep.subr.bf16.mxu0 0
    %389 = vmatpush1.bf16.msra.mxu0 %v379
    %390 = vmatprep.subr.bf16.mxu0 0
    %391 = vmatpush1.bf16.msra.mxu0 %v380
    %392 = vmatprep.subr.bf16.mxu0 0
    %393 = vmatpush1.bf16.msra.mxu0 %v381
    %394 = vmatprep.subr.bf16.mxu0 0
    %395 = vmatpush1.bf16.msra.mxu0 0
    %396 = vmatprep.subr.bf16.mxu0 0
    %397 = vmatpush1.bf16.msra.mxu0 0
    %398 = vmatprep.subr.bf16.mxu0 0
    %399 = vmatpush1.bf16.msra.mxu0 0
    %400 = vmatprep.subr.bf16.mxu0 0
    %401 = vmatpush1.bf16.msra.mxu0 0
    %402 = vmatprep.subr.bf16.mxu0 0
    %403 = vmatpush1.bf16.msra.mxu0 0
    %404 = vmatprep.subr.bf16.mxu0 0
    %405 = vmatpush1.bf16.msra.mxu0 0
    %406 = vmatprep.subr.bf16.mxu0 0
    %407 = vmatpush1.bf16.msra.mxu0 0
    %408 = vmatprep.subr.bf16.mxu0 0
    %409 = vmatpush1.bf16.msra.mxu0 0
    %410 = vmatprep.subr.bf16.mxu0 0
    %411 = vmatpush1.bf16.msra.mxu0 0
    %412 = vmatprep.subr.bf16.mxu0 0
    %413 = vmatpush1.bf16.msra.mxu0 0
    %414 = vmatprep.subr.bf16.mxu0 0
    %415 = vmatpush1.bf16.msra.mxu0 0
    %416 = vmatprep.subr.bf16.mxu0 0
    %417 = vmatpush1.bf16.msra.mxu0 0
    %418 = vmatprep.mubr.bf16.mxu0 0
    %419 = vmatmul.mubr.bf16.gmra.mrb[0].mxu0 %v305
    %v420 = vpop.f32.mrb[0].mxu0
    %v421 = vadd.f32 %v360, %v420
    %v422 = vpop.f32.mrb[0].mxu0
    %v423 = vpop.f32.mrb[0].mxu0
    %v424 = vpop.f32.mrb[0].mxu0
    %425 = vdwg.mxu0
    %v426 = vtanh.pop %v342
    %v427 = vmul.f32 %v426, 1.442695
    %v428 = vpow.pop %v427
    %v429 = vmul.f32 %v52, %v428
    %v430 = vadd.f32 %v429, %v421
    %v432 = vlaneseq
    %v433 = vshrl.u32 %v432, 7
    %v434 = vsub.s32 0, %v433
    %v435 = vrot.slane %v54, %v434
    %v437 = vmul.f32 %v435, %v430
    %v438 = vadd.f32 %v61, %v437
    %v439 = vmul.f32 %v435, %v426
    %440 = vadd.xlane.f32.xlu0 %v439
    %v441 = vpop.xlane.xlu0 %440
    %v442 = vlaneseq
    %v443 = vand.u32 %v442, 127
    %vm444 = vcmp.eq.s32.totalorder %v443, 16
    %v445 = vsel %vm444, %v441, %v438
    %446 = vst [vmem:[#allocation5] sm:$0xff] %v445
    // Predicated region
    $region50: #{tpu_custom_call.1} parent=1 // pred_check
      _
    $region51: #{tpu_custom_call.1} parent=1 // pred_check_branch
      %448 = sbr.rel (0) target = $region53
    $region52: #{tpu_custom_call.1} parent=1 // pred_region
      %s450 = ssub.s32 128, 128
      %451 = vsyncadd [#allocation4], %s450
      %s453 = sshll.u32 [#allocation5], 4
      %s454 = int_to_ptr.vmem [resolvable:$true] %s453
      %456 = dma.vmem_to_hbm [thread:$0]  %s454, 128, %s11, [#allocation4]
    $region53: #{tpu_custom_call.1} parent=1 // pred_fallthru
      _
    // Predicated region
    $region54: #{tpu_custom_call.1} parent=1 // pred_check
      _
    $region55: #{tpu_custom_call.1} parent=1 // pred_check_branch
      %458 = sbr.rel (0) target = $region57
    $region56: #{tpu_custom_call.1} parent=1 // pred_region
      %459 = dma.done [#allocation4], 128
    $region57: #{tpu_custom_call.1} parent=1 // pred_fallthru
      _
    %460 = vsyncpa [#allocation3], 1
    %461 = vsyncpa [#allocation4], 1

</llo_original>
